<compile_context>
chip_gen: v7x
topology: tpu7x:2x2x1
jax: 0.10.0
libtpu: 0.0.40
codegen_flags: <defaults>
</compile_context>

<pallas_src>
import jax
import jax.numpy as jnp
from jax.experimental import pallas as pl
from jax.experimental.pallas import tpu as pltpu


def _ind_gaussian_tile_kernel(scale_ref, xi_ref, xj_ref, o_ref):
    # scale_ref : SMEM (1,) f32, holds -1 / (2 * sigma^2)
    # xi_ref    : VMEM (bt, ti, 1)  -- pairwise "i" values on sublanes
    # xj_ref    : VMEM (bt, 1, N)   -- pairwise "j" values on lanes
    # o_ref     : VMEM (bt, ti, N)
    scale = scale_ref[0]
    xi = xi_ref[...].astype(jnp.float32)
    xj = xj_ref[...].astype(jnp.float32)
    diff = xi - xj                      # dual broadcast, no XLU relayout
    # TODO(synk): on v6e/v7x a bf16 EUP exp (cast diff*diff*scale to bf16
    # before jnp.exp when o_ref is bf16) doubles transcendental throughput;
    # kept in f32 until that lowering is verified on every generation.
    o_ref[...] = jnp.exp(diff * diff * scale).astype(o_ref.dtype)


def _target_block_bytes():
    """Generation-aware output-block budget.

    v7x (64 MiB VMEM, ~3.2 TB/s HBM): ~8 MiB blocks keep the ~0.35 us
    per-grid-step overhead <10% of the writeback time.
    v5e/v6e (128 MiB VMEM): ~4 MiB is already >=85% of HBM roofline and keeps
    the double-buffered working set small (v5e scoped default is 16 MiB).
    """
    try:
        vmem_cap = int(pltpu.get_tpu_info().vmem_capacity_bytes)
    except Exception:
        vmem_cap = 128 << 20
    return (8 << 20) if vmem_cap <= (64 << 20) else (4 << 20)


def _pick_tiles(B, N, elem_bytes, target_bytes):
    """Choose (bt, ti) for output blocks of shape (bt, ti, N).

    * ti = largest multiple of 8 with ti*N*elem_bytes <= target_bytes (legal
      for any N; the final partial block is masked), or the full N when a
      whole (.., N, N) slab fits the budget.
    * bt only grows once ti == N, so output blocks stay contiguous in the
      row-major (B, N, N) layout -> streaming writeback DMA.
    * no divisibility of B or N is required; the grid uses pl.cdiv.
    """
    row_bytes = N * elem_bytes
    ti = max(8, (target_bytes // row_bytes) // 8 * 8)
    bt = 1
    if ti >= N:
        ti = N                                           # full extent
        bt = max(1, min(B, target_bytes // (N * row_bytes)))
    # Keep >=2 grid blocks when possible (v7x megacore; no-op on v5e/v6e).
    if B > 1 and pl.cdiv(B, bt) * pl.cdiv(N, ti) < 2:
        bt = pl.cdiv(B, 2)
    return bt, ti


def ind_gaussian_kernel(x, *, sigma=None, track_running_stats=True, alpha=1.0,
                        out_dtype=None, target_bytes=None):
    assert track_running_stats or sigma is not None
    orig_shape = x.shape
    N = orig_shape[-1]
    x2d = x.reshape(-1, N)              # keep input dtype; kernel casts to f32
    B = x2d.shape[0]

    if out_dtype is None:
        out_dtype = x.dtype if jnp.issubdtype(x.dtype, jnp.floating) else jnp.float32
    out_dtype = jnp.dtype(out_dtype)

    if track_running_stats:
        # sigma^2 = alpha * mean(l2) via the closed form on centered row sums:
        #   sum_{i,j} (x_i - x_j)^2 = 2*N * sum_i (x_i - mean)^2   (per row)
        xf = x2d.astype(jnp.float32)
        c = xf - jnp.mean(xf, axis=1, keepdims=True)
        sigma_sq = jnp.float32(alpha) * (2.0 * jnp.sum(c * c) / jnp.float32(B * N))
    else:
        # jnp math (not float()) so traced / array sigma works under jit.
        s = jnp.asarray(sigma, dtype=jnp.float32)
        sigma_sq = s * s
    # -1/(2*sigma^2) as a runtime SMEM scalar (no recompile per sigma value).
    scale = (-0.5 / sigma_sq).reshape(1).astype(jnp.float32)

    # TODO(synk): the (B,N,1) copy could be removed by slicing + transposing
    # the resident x_row block on the XLU inside the kernel; kept as a
    # separate (tiny) input stream until that narrow transpose is verified.
    x_col = x2d.reshape(B, N, 1)        # "i" operand, sublane-major
    x_row = x2d.reshape(B, 1, N)        # "j" operand, lane-major

    if target_bytes is None:
        target_bytes = _target_block_bytes()
    bt, ti = _pick_tiles(B, N, out_dtype.itemsize, target_bytes)
    grid = (pl.cdiv(B, bt), pl.cdiv(N, ti))

    in_bytes = jnp.dtype(x.dtype).itemsize
    cost = pl.CostEstimate(
        flops=3 * B * N * N,                       # sub + 2 mul per element
        transcendentals=B * N * N,                 # one exp per element
        bytes_accessed=B * N * N * out_dtype.itemsize + 2 * B * N * in_bytes,
    )

    out = pl.pallas_call(
        _ind_gaussian_tile_kernel,
        out_shape=jax.ShapeDtypeStruct((B, N, N), out_dtype),
        grid=grid,
        in_specs=[
            pl.BlockSpec(memory_space=pltpu.MemorySpace.SMEM),    # scale
            pl.BlockSpec((bt, ti, 1), lambda b, i: (b, i, 0)),    # x_col
            pl.BlockSpec((bt, 1, N), lambda b, i: (b, 0, 0)),     # x_row
        ],
        out_specs=pl.BlockSpec((bt, ti, N), lambda b, i: (b, i, 0)),
        compiler_params=pltpu.CompilerParams(
            dimension_semantics=("parallel", "parallel"),
            vmem_limit_bytes=32 << 20),
        cost_estimate=cost,
    )(scale, x_col, x_row)

    return out.reshape(orig_shape + (N,))


def _reference(x, *, sigma=None, track_running_stats=True, alpha=1.0):
    l2 = (x[..., :, None] - x[..., None, :]) ** 2
    if track_running_stats:
        sigma_sq = alpha * jnp.mean(l2)
    else:
        sigma_sq = jnp.asarray(sigma, jnp.float32) ** 2
    return jnp.exp(-l2 / (2.0 * sigma_sq))


if __name__ == "__main__":
    key = jax.random.PRNGKey(0)

    # Small shape consistent with the module: (batch=2, channels=4, seq=16).
    X1 = jax.random.normal(key, (2, 4, 16), dtype=jnp.float32)
    out1 = jax.block_until_ready(
        ind_gaussian_kernel(X1, track_running_stats=True, alpha=1.0))
    ref1 = _reference(X1, track_running_stats=True, alpha=1.0)
    assert out1.shape == X1.shape + (X1.shape[-1],)
    assert jnp.allclose(out1, ref1, atol=1e-5, rtol=1e-5)

    # Lane-aligned shape: (batch=2, seq=8, hidden=128) -> (2, 8, 128, 128).
    X2 = jax.random.normal(jax.random.PRNGKey(1), (2, 8, 128), dtype=jnp.float32)
    out2 = jax.block_until_ready(
        ind_gaussian_kernel(X2, track_running_stats=True, alpha=0.5))
    ref2 = _reference(X2, track_running_stats=True, alpha=0.5)
    assert jnp.allclose(out2, ref2, atol=1e-5, rtol=1e-5)

    # Fixed-sigma path (track_running_stats=False), sigma given as a jnp scalar.
    out3 = jax.block_until_ready(
        ind_gaussian_kernel(X2, sigma=jnp.float32(1.5), track_running_stats=False))
    ref3 = _reference(X2, sigma=1.5, track_running_stats=False)
    assert jnp.allclose(out3, ref3, atol=1e-5, rtol=1e-5)

    # Non-multiple-of-8 N with a tiny block budget -> partial (masked) blocks
    # along both grid axes.
    X4 = jax.random.normal(jax.random.PRNGKey(2), (3, 100), dtype=jnp.float32)
    out4 = jax.block_until_ready(
        ind_gaussian_kernel(X4, track_running_stats=True, alpha=1.0,
                            target_bytes=16 << 10))
    ref4 = _reference(X4, track_running_stats=True, alpha=1.0)
    assert out4.shape == (3, 100, 100)
    assert jnp.allclose(out4, ref4, atol=1e-5, rtol=1e-5)

    # bf16 output path (halves the dominant HBM writeback); exp still in f32.
    out5 = jax.block_until_ready(
        ind_gaussian_kernel(X2, track_running_stats=True, alpha=0.5,
                            out_dtype=jnp.bfloat16))
    assert out5.dtype == jnp.bfloat16
    assert jnp.allclose(out5.astype(jnp.float32), ref2, atol=2e-2)

    print("KERNEL_OK")
</pallas_src>

<mosaic_0001>
module attributes {stable_mosaic.version = 11 : i64} {
  func.func @_ind_gaussian_tile_kernel(%arg0: i32, %arg1: i32, %arg2: memref<1xf32, #tpu.memory_space<smem>>, %arg3: memref<4x16x1xf32, #tpu.memory_space<vmem>>, %arg4: memref<4x1x16xf32, #tpu.memory_space<vmem>>, %arg5: memref<4x16x16xf32, #tpu.memory_space<vmem>>) attributes {dimension_semantics = [#tpu.dimension_semantics<parallel>, #tpu.dimension_semantics<parallel>], iteration_bounds = array<i64: 2, 1>, scalar_prefetch = 0 : i64, scratch_operands = 0 : i64, tpu.core_type = #tpu.core_type<tc>, window_params = [{transform_indices = @transform_0, window_bounds = array<i64: 1>}, {transform_indices = @transform_1, window_bounds = array<i64: 4, 16, 1>}, {transform_indices = @transform_2, window_bounds = array<i64: 4, 1, 16>}, {transform_indices = @transform_3, window_bounds = array<i64: 4, 16, 16>}]} {
    %c0 = arith.constant 0 : index
    %0 = memref.load %arg2[%c0] : memref<1xf32, #tpu.memory_space<smem>>
    %c0_0 = arith.constant 0 : index
    %c0_1 = arith.constant 0 : index
    %c0_2 = arith.constant 0 : index
    %1 = vector.load %arg3[%c0_0, %c0_1, %c0_2] : memref<4x16x1xf32, #tpu.memory_space<vmem>>, vector<4x16x1xf32>
    %c0_3 = arith.constant 0 : index
    %c0_4 = arith.constant 0 : index
    %c0_5 = arith.constant 0 : index
    %2 = vector.load %arg4[%c0_3, %c0_4, %c0_5] : memref<4x1x16xf32, #tpu.memory_space<vmem>>, vector<4x1x16xf32>
    %3 = vector.broadcast %1 : vector<4x16x1xf32> to vector<4x16x16xf32>
    %4 = vector.broadcast %2 : vector<4x1x16xf32> to vector<4x16x16xf32>
    %5 = arith.subf %3, %4 : vector<4x16x16xf32>
    %6 = arith.mulf %5, %5 : vector<4x16x16xf32>
    %7 = vector.broadcast %0 : f32 to vector<4x16x16xf32>
    %8 = arith.mulf %6, %7 : vector<4x16x16xf32>
    %9 = math.exp %8 : vector<4x16x16xf32>
    %c0_6 = arith.constant 0 : index
    %c0_7 = arith.constant 0 : index
    %c0_8 = arith.constant 0 : index
    %10 = vector.load %arg5[%c0_6, %c0_7, %c0_8] : memref<4x16x16xf32, #tpu.memory_space<vmem>>, vector<4x16x16xf32>
    tpu.vector_store %arg5[%c0_6, %c0_7, %c0_8], %9 {strides = array<i32>} : memref<4x16x16xf32, #tpu.memory_space<vmem>>, vector<4x16x16xf32>,
    return
  }
  func.func @transform_0(%arg0: i32, %arg1: i32) -> i32 {
    %c0_i32 = arith.constant 0 : i32
    %c0_i32_0 = arith.constant 0 : i32
    return %c0_i32 : i32
  }
  func.func @transform_1(%arg0: i32, %arg1: i32) -> (i32, i32, i32) {
    %c0_i32 = arith.constant 0 : i32
    %c0_i32_0 = arith.constant 0 : i32
    return %arg0, %arg1, %c0_i32 : i32, i32, i32
  }
  func.func @transform_2(%arg0: i32, %arg1: i32) -> (i32, i32, i32) {
    %c0_i32 = arith.constant 0 : i32
    %c0_i32_0 = arith.constant 0 : i32
    %c0_i32_1 = arith.constant 0 : i32
    return %arg0, %c0_i32, %c0_i32_0 : i32, i32, i32
  }
  func.func @transform_3(%arg0: i32, %arg1: i32) -> (i32, i32, i32) {
    %c0_i32 = arith.constant 0 : i32
    %c0_i32_0 = arith.constant 0 : i32
    return %arg0, %arg1, %c0_i32 : i32, i32, i32
  }
}

</mosaic_0001>

<llo_original>
// kernel: tpu_custom_call.1
$region0: #{tpu_custom_call.1}
  #allocation0 [shape = 'u32[]', space=smem, size = 0x4, offset = 0x4, fixed_abs, tag = 'smem constant byte address 0x4 - core index']
  #allocation1 [shape = 'u32[144,128]{1,0:T(1,128)}', space=vmem, size = 0x12000, scoped, tag = 'internal scratch']
  #allocation2 [shape = 'f32[1]{0:T(128)S(6)}', space=smem, size = 0x200, scoped, tag = 'scoped memory for tpu_custom_call.1']
  %s0 = inlined_call_operand.<no memory space> [shape: f32[1], index: 0, kind: input, shape index: {}]
  %s1 = inlined_call_operand.vmem [shape: f32[8,16,1], index: 1, kind: input, shape index: {}]
  %s2 = inlined_call_operand.vmem [shape: f32[8,1,16], index: 2, kind: input, shape index: {}]
  %s3 = inlined_call_operand.hbm [shape: f32[8,16,16], index: 3, kind: output, shape index: {}]
  %s4 = sld [smem:[#allocation0]]
  $region45: #{tpu_custom_call.1} parent=0
    _
  %s6 = ssub.s32 1, %s4
  %s7 = scalar_select 0, %s6, %s4
  %8 = sst [smem:[#allocation2]] %s0
  $region1: #{tpu_custom_call.1} parent=0
    #allocation3 [shape = 'u8[65536]{0}', space=vmem, size = 0x10000, scoped, tag = 'output window, operand 0']
    #allocation4 [shape = 's32[2]{0}', space=sflag, size = 0x8, scoped, tag = 'scoped memory for tpu_custom_call.1']
    %9 = vsyncpa [#allocation4], 0
    %s10 = scalar_lea.sflag [#allocation4], 1
    %11 = vsyncpa %s10, 0
    loop: start=0, step=1, limit=4
    $region2: #{tpu_custom_call.1} parent=1 // loop_pre_header
      _
    $region3: #{tpu_custom_call.1} parent=1 // loop_header
      %s13 = sphi 0, %s17
      %p14 = scmp.ge.s32.totalorder %s13, 4
      %s20 = sphi 0, %s32
      %s21 = sphi 0, %s28
      %s22 = sphi 0, %s20
      %s23 = sphi 0, %s21
      %s24 = sphi 0, %s22
      %s25 = sphi 0, %s23
      %s33 = sphi 0, %s33
      %s35 = sphi 0, %s33
      %s36 = sphi 0, %s35
      %s50 = sphi 0, %s36
      %s58 = sphi 0, %s60
      %s61 = sphi 0, %s58
      %s62 = sphi 0, %s61
      %s78 = sphi 0, %s62
      %s84 = sphi 0, %s86
      %s87 = sphi 0, %s84
      %s88 = sphi 0, %s87
      %s104 = sphi 0, %s88
      %s112 = sphi 0, %s114
      %s115 = sphi 0, %s112
      %s116 = sphi 0, %s115
      %s132 = sphi 0, %s116
    $region4: #{tpu_custom_call.1} parent=1 // loop_header_branch
      %16 = sbr.rel (%p14) target = $region8
    $region5: #{tpu_custom_call.1} parent=1 // loop_body
      %s18 = ssub.s32 %s13, 1
      %s19 = ssub.s32 %s13, 2
      %s26 = sadd.s32 1, %s21
      %p27 = scmp.ge.s32.totalorder %s26, 1
      %s28 = scalar_select %p27, 0, %s26
      %s29 = sadd.s32 1, %s20
      %s30 = scalar_select %p27, %s29, %s20
      %p31 = scmp.ge.s32.totalorder %s30, 2
      %s32 = scalar_select %p31, 0, %s30
      %s34 = sadd.s32 %s33, 1
      %p37 = scmp.eq.s32.totalorder %s13, 1
      %p38 = scmp.ne.s32.totalorder %s33, %s35
      %p39 = scmp.eq.s32.totalorder %s13, 0
      %p40 = por %p38, %p39
      %p41 = scmp.ne.s32.totalorder %s33, %s35
      %p42 = scmp.eq.s32.totalorder %s18, 1
      %p43 = por %p41, %p42
      %p44 = scmp.ne.s32.totalorder %s35, %s36
      %p45 = scmp.eq.s32.totalorder %s18, 0
      %p46 = por %p44, %p45
      %p47 = scmp.ne.s32.totalorder %s35, %s36
      %p48 = scmp.eq.s32.totalorder %s19, 1
      %p49 = por %p47, %p48
      %p51 = scmp.ne.s32.totalorder %s36, %s50
      %p52 = scmp.eq.s32.totalorder %s19, 0
      %p53 = por %p51, %p52
      %s54 = ssub.s32 %s20, %s32
      %s55 = ssub.s32 %s21, %s28
      %s56 = sor.u32 %s54, %s55
      %p57 = scmp.eq.s32.totalorder %s56, 0
      %s59 = sadd.s32 %s58, 1
      %s60 = scalar_select %p57, %s58, %s59
      %p63 = pneg %p57
      %p64 = scmp.eq.s32.totalorder %s13, 1
      %p65 = por %p63, %p64
      %p66 = scmp.ne.s32.totalorder %s58, %s61
      %p67 = scmp.eq.s32.totalorder %s13, 0
      %p68 = por %p66, %p67
      %p69 = scmp.ne.s32.totalorder %s58, %s61
      %p70 = scmp.eq.s32.totalorder %s18, 1
      %p71 = por %p69, %p70
      %p72 = scmp.ne.s32.totalorder %s61, %s62
      %p73 = scmp.eq.s32.totalorder %s18, 0
      %p74 = por %p72, %p73
      %p75 = scmp.ne.s32.totalorder %s61, %s62
      %p76 = scmp.eq.s32.totalorder %s19, 1
      %p77 = por %p75, %p76
      %p79 = scmp.ne.s32.totalorder %s62, %s78
      %p80 = scmp.eq.s32.totalorder %s19, 0
      %p81 = por %p79, %p80
      %s82 = ssub.s32 %s20, %s32
      %p83 = scmp.eq.s32.totalorder %s82, 0
      %s85 = sadd.s32 %s84, 1
      %s86 = scalar_select %p83, %s84, %s85
      %p89 = pneg %p83
      %p90 = scmp.eq.s32.totalorder %s13, 1
      %p91 = por %p89, %p90
      %p92 = scmp.ne.s32.totalorder %s84, %s87
      %p93 = scmp.eq.s32.totalorder %s13, 0
      %p94 = por %p92, %p93
      %p95 = scmp.ne.s32.totalorder %s84, %s87
      %p96 = scmp.eq.s32.totalorder %s18, 1
      %p97 = por %p95, %p96
      %p98 = scmp.ne.s32.totalorder %s87, %s88
      %p99 = scmp.eq.s32.totalorder %s18, 0
      %p100 = por %p98, %p99
      %p101 = scmp.ne.s32.totalorder %s87, %s88
      %p102 = scmp.eq.s32.totalorder %s19, 1
      %p103 = por %p101, %p102
      %p105 = scmp.ne.s32.totalorder %s88, %s104
      %p106 = scmp.eq.s32.totalorder %s19, 0
      %p107 = por %p105, %p106
      %s108 = ssub.s32 %s20, %s32
      %s109 = ssub.s32 %s21, %s28
      %s110 = sor.u32 %s108, %s109
      %p111 = scmp.eq.s32.totalorder %s110, 0
      %s113 = sadd.s32 %s112, 1
      %s114 = scalar_select %p111, %s112, %s113
      %p117 = pneg %p111
      %p118 = scmp.eq.s32.totalorder %s13, 1
      %p119 = por %p117, %p118
      %p120 = scmp.ne.s32.totalorder %s112, %s115
      %p121 = scmp.eq.s32.totalorder %s13, 0
      %p122 = por %p120, %p121
      %p123 = scmp.ne.s32.totalorder %s112, %s115
      %p124 = scmp.eq.s32.totalorder %s18, 1
      %p125 = por %p123, %p124
      %p126 = scmp.ne.s32.totalorder %s115, %s116
      %p127 = scmp.eq.s32.totalorder %s18, 0
      %p128 = por %p126, %p127
      %p129 = scmp.ne.s32.totalorder %s115, %s116
      %p130 = scmp.eq.s32.totalorder %s19, 1
      %p131 = por %p129, %p130
      %p133 = scmp.ne.s32.totalorder %s116, %s132
      %p134 = scmp.eq.s32.totalorder %s19, 0
      %p135 = por %p133, %p134
      %p136 = scmp.le.s32.totalorder 1, %s13
      %p137 = scmp.lt.s32.totalorder %s13, 3
      %p138 = pnand %p136, %p137
      %p139 = pneg %p138
      // Predicated region
      $region9: #{tpu_custom_call.1} parent=5 // pred_check
        _
      $region10: #{tpu_custom_call.1} parent=5 // pred_check_branch
        %141 = sbr.rel (%p138) target = $region12
      $region11: #{tpu_custom_call.1} parent=5 // pred_region
        %s142 = ssub.s32 %s13, 1
        // Predicated region
        $region13: #{tpu_custom_call.1} parent=11 // pred_check
          %p143 = pneg %p46
        $region14: #{tpu_custom_call.1} parent=11 // pred_check_branch
          %145 = sbr.rel (%p143) target = $region16
        $region15: #{tpu_custom_call.1} parent=11 // pred_region
          _
        $region16: #{tpu_custom_call.1} parent=11 // pred_fallthru
          _
      $region12: #{tpu_custom_call.1} parent=5 // pred_fallthru
        _
      %p146 = scmp.lt.s32.totalorder %s13, 2
      // Predicated region
      $region17: #{tpu_custom_call.1} parent=5 // pred_check
        %p147 = pneg %p146
      $region18: #{tpu_custom_call.1} parent=5 // pred_check_branch
        %149 = sbr.rel (%p147) target = $region20
      $region19: #{tpu_custom_call.1} parent=5 // pred_region
        // Predicated region
        $region21: #{tpu_custom_call.1} parent=19 // pred_check
          %p150 = pneg %p68
        $region22: #{tpu_custom_call.1} parent=19 // pred_check_branch
          %152 = sbr.rel (%p150) target = $region24
        $region23: #{tpu_custom_call.1} parent=19 // pred_region
          %s153 = smul.u32 4, %s20
          %s154 = smul.u32 2, %s21
          %p155 = scmp.lt.s32.totalorder %s153, 7
          %s156 = scalar_select %p155, %s153, 7
          %p157 = scmp.lt.s32.totalorder %s154, 1
          %s158 = scalar_select %p157, %s154, 1
          %s159 = smul.addr %s156, 2
          %s160 = sadd.s32 %s158, %s159
          %s161 = smul.addr %s160, 8
          %s162 = scalar_lea.vmem %s1, %s161
          %s163 = smul.u32 4, %s20
          %s164 = smul.u32 2, %s21
        $region24: #{tpu_custom_call.1} parent=19 // pred_fallthru
          _
        // Predicated region
        $region25: #{tpu_custom_call.1} parent=19 // pred_check
          %p165 = pneg %p94
        $region26: #{tpu_custom_call.1} parent=19 // pred_check_branch
          %167 = sbr.rel (%p165) target = $region28
        $region27: #{tpu_custom_call.1} parent=19 // pred_region
          %s168 = smul.u32 4, %s20
          %p169 = scmp.lt.s32.totalorder %s168, 7
          %s170 = scalar_select %p169, %s168, 7
          %s171 = scalar_lea.vmem %s2, %s170
          %s172 = smul.u32 4, %s20
        $region28: #{tpu_custom_call.1} parent=19 // pred_fallthru
          _
      $region20: #{tpu_custom_call.1} parent=5 // pred_fallthru
        _
      %p173 = scmp.le.s32.totalorder 1, %s13
      %p174 = scmp.lt.s32.totalorder %s13, 3
      %p175 = pnand %p173, %p174
      %p176 = pneg %p175
      // Predicated region
      $region29: #{tpu_custom_call.1} parent=5 // pred_check
        _
      $region30: #{tpu_custom_call.1} parent=5 // pred_check_branch
        %178 = sbr.rel (%p175) target = $region32
      $region31: #{tpu_custom_call.1} parent=5 // pred_region
        %s179 = ssub.s32 %s13, 1
        %p180 = pneg %p46
        %p181 = pneg %p43
        %s182 = smul.u32 4, %s22
        %s183 = smul.u32 2, %s23
        %p184 = scmp.lt.s32.totalorder %s182, 7
        %s185 = scalar_select %p184, %s182, 7
        %p186 = scmp.lt.s32.totalorder %s183, 1
        %s187 = scalar_select %p186, %s183, 1
        %s188 = smul.addr %s185, 2
        %s189 = sadd.s32 %s187, %s188
        %s190 = smul.addr %s189, 8
        %s191 = scalar_lea.vmem %s1, %s190
        %p192 = pneg %p74
        %p193 = pneg %p71
        %s194 = smul.u32 4, %s22
        %p195 = scmp.lt.s32.totalorder %s194, 7
        %s196 = scalar_select %p195, %s194, 7
        %s197 = scalar_lea.vmem %s2, %s196
        %p198 = pneg %p100
        %p199 = pneg %p97
        %p200 = pneg %p128
        %p201 = pneg %p125
        %s202 = sand.u32 %s115, 1
        %s203 = scalar_lea.sflag [#allocation4], %s202
        %s204 = sand.u32 %s115, 1
        %s205 = smul.addr %s204, 64
        %s206 = scalar_lea.vmem [#allocation3], %s205
        %s207 = smul.u32 4, %s22
        %s208 = smul.u32 2, %s23
        %p209 = scmp.lt.s32.totalorder %s207, 7
        %s210 = scalar_select %p209, %s207, 7
        %p211 = scmp.lt.s32.totalorder %s208, 1
        %s212 = scalar_select %p211, %s208, 1
        %s213 = smul.addr %s210, 2
        %s214 = sadd.s32 %s212, %s213
        %s215 = smul.addr %s214, 8
        %s216 = scalar_lea.vmem %s1, %s215
        %s217 = smul.u32 4, %s22
        %s218 = smul.u32 2, %s23
        %s219 = smul.u32 4, %s22
        %p220 = scmp.lt.s32.totalorder %s219, 7
        %s221 = scalar_select %p220, %s219, 7
        %s222 = scalar_lea.vmem %s2, %s221
        %s223 = smul.u32 4, %s22
        %s224 = smul.u32 4, %s22
        %s225 = smul.u32 2, %s23
        %s226 = sld [smem:[#allocation2]]
        %v227 = vld [vmem:[%s216] sm:$0xff]
        %v228 = vld [vmem:[%s216 + $0x8] sm:$0xff]
        %v229 = vld [vmem:[%s216 + $0x10] sm:$0xff]
        %v230 = vld [vmem:[%s216 + $0x18] sm:$0xff]
        %v231 = vld [vmem:[%s216 + $0x20] sm:$0xff]
        %v232 = vld [vmem:[%s216 + $0x28] sm:$0xff]
        %v233 = vld [vmem:[%s216 + $0x30] sm:$0xff]
        %v234 = vld [vmem:[%s216 + $0x38] sm:$0xff]
        %v235 = vld [vmem:[%s222] sm:$0x1]
        %v236 = vld [vmem:[%s222 + $0x1] sm:$0x1]
        %v237 = vld [vmem:[%s222 + $0x2] sm:$0x1]
        %v238 = vld [vmem:[%s222 + $0x3] sm:$0x1]
        %240 = vset.pattern.permute.xlu0 0
        %241 = vperm.xlu0 %240, %v227
        %v242 = vpop.permute.xlu0 %241
        %245 = vset.pattern.permute.xlu0 0
        %246 = vperm.xlu0 %245, %v228
        %v247 = vpop.permute.xlu0 %246
        %250 = vset.pattern.permute.xlu0 0
        %251 = vperm.xlu0 %250, %v229
        %v252 = vpop.permute.xlu0 %251
        %255 = vset.pattern.permute.xlu0 0
        %256 = vperm.xlu0 %255, %v230
        %v257 = vpop.permute.xlu0 %256
        %260 = vset.pattern.permute.xlu0 0
        %261 = vperm.xlu0 %260, %v231
        %v262 = vpop.permute.xlu0 %261
        %265 = vset.pattern.permute.xlu0 0
        %266 = vperm.xlu0 %265, %v232
        %v267 = vpop.permute.xlu0 %266
        %270 = vset.pattern.permute.xlu0 0
        %271 = vperm.xlu0 %270, %v233
        %v272 = vpop.permute.xlu0 %271
        %275 = vset.pattern.permute.xlu0 0
        %276 = vperm.xlu0 %275, %v234
        %v277 = vpop.permute.xlu0 %276
        %v283 = vlaneseq
        %v284 = vshrl.u32 %v283, 7
        %v285 = vsub.s32 0, %v284
        %v286 = vrot.slane %v235, %v285
        %v287 = vlaneseq
        %v288 = vshrl.u32 %v287, 7
        %v289 = vsub.s32 0, %v288
        %v290 = vrot.slane %v236, %v289
        %v291 = vlaneseq
        %v292 = vshrl.u32 %v291, 7
        %v293 = vsub.s32 0, %v292
        %v294 = vrot.slane %v237, %v293
        %v295 = vlaneseq
        %v296 = vshrl.u32 %v295, 7
        %v297 = vsub.s32 0, %v296
        %v298 = vrot.slane %v238, %v297
        %v303 = vsub.f32 %v242, %v286
        %v304 = vsub.f32 %v247, %v286
        %v305 = vsub.f32 %v252, %v290
        %v306 = vsub.f32 %v257, %v290
        %v307 = vsub.f32 %v262, %v294
        %v308 = vsub.f32 %v267, %v294
        %v309 = vsub.f32 %v272, %v298
        %v310 = vsub.f32 %v277, %v298
        %v311 = vmul.f32 %v303, %v303
        %v312 = vmul.f32 %v304, %v304
        %v313 = vmul.f32 %v305, %v305
        %v314 = vmul.f32 %v306, %v306
        %v315 = vmul.f32 %v307, %v307
        %v316 = vmul.f32 %v308, %v308
        %v317 = vmul.f32 %v309, %v309
        %v318 = vmul.f32 %v310, %v310
        %v319 = vstv %s226
        %v320 = vmul.f32 %v311, %v319
        %v321 = vmul.f32 %v312, %v319
        %v322 = vmul.f32 %v313, %v319
        %v323 = vmul.f32 %v314, %v319
        %v324 = vmul.f32 %v315, %v319
        %v325 = vmul.f32 %v316, %v319
        %v326 = vmul.f32 %v317, %v319
        %v327 = vmul.f32 %v318, %v319
        %v328 = vmul.f32 %v320, 1.442695
        %v329 = vpow.pop %v328
        %v330 = vmul.f32 %v321, 1.442695
        %v331 = vpow.pop %v330
        %v332 = vmul.f32 %v322, 1.442695
        %v333 = vpow.pop %v332
        %v334 = vmul.f32 %v323, 1.442695
        %v335 = vpow.pop %v334
        %v336 = vmul.f32 %v324, 1.442695
        %v337 = vpow.pop %v336
        %v338 = vmul.f32 %v325, 1.442695
        %v339 = vpow.pop %v338
        %v340 = vmul.f32 %v326, 1.442695
        %v341 = vpow.pop %v340
        %v342 = vmul.f32 %v327, 1.442695
        %v343 = vpow.pop %v342
        %vm344 = vcmask 130048
        %345 = vst.msk [vmem:[%s206] sm:$0xff] %vm344, %v329
        %346 = vst.msk [vmem:[%s206 + $0x8] sm:$0xff] %vm344, %v331
        %347 = vst.msk [vmem:[%s206 + $0x10] sm:$0xff] %vm344, %v333
        %348 = vst.msk [vmem:[%s206 + $0x18] sm:$0xff] %vm344, %v335
        %349 = vst.msk [vmem:[%s206 + $0x20] sm:$0xff] %vm344, %v337
        %350 = vst.msk [vmem:[%s206 + $0x28] sm:$0xff] %vm344, %v339
        %351 = vst.msk [vmem:[%s206 + $0x30] sm:$0xff] %vm344, %v341
        %352 = vst.msk [vmem:[%s206 + $0x38] sm:$0xff] %vm344, %v343
        %s353 = sand.u32 %s115, 1
        %s354 = scalar_lea.sflag [#allocation4], %s353
        %s355 = sand.u32 %s115, 1
        %s356 = smul.addr %s355, 64
        %s357 = scalar_lea.vmem [#allocation3], %s356
        // Predicated region
        $region33: #{tpu_custom_call.1} parent=31 // pred_check
          %p358 = pneg %p125
        $region34: #{tpu_custom_call.1} parent=31 // pred_check_branch
          %360 = sbr.rel (%p358) target = $region36
        $region35: #{tpu_custom_call.1} parent=31 // pred_region
          %s361 = smul.u32 4, %s22
          %s362 = smul.u32 2, %s23
          %s364 = ssub.s32 1024, 1024
          %365 = vsyncadd %s354, %s364
          %s366 = smul.addr %s361, 2
          %s367 = sadd.s32 %s362, %s366
          %s368 = smul.addr %s367, 128
          %s369 = scalar_lea.hbm %s3, %s368
          %s370 = sshll.u32 %s357, 4
          %s371 = int_to_ptr.vmem [resolvable:$true] %s370
          %376 = dma.vmem_to_hbm [thread:$0]  %s371, 1024, %s369, %s354, 128, 128, 8
        $region36: #{tpu_custom_call.1} parent=31 // pred_fallthru
          _
      $region32: #{tpu_custom_call.1} parent=5 // pred_fallthru
        _
      %p377 = scmp.le.s32.totalorder 2, %s13
      // Predicated region
      $region37: #{tpu_custom_call.1} parent=5 // pred_check
        %p378 = pneg %p377
      $region38: #{tpu_custom_call.1} parent=5 // pred_check_branch
        %380 = sbr.rel (%p378) target = $region40
      $region39: #{tpu_custom_call.1} parent=5 // pred_region
        %s381 = ssub.s32 %s13, 2
        // Predicated region
        $region41: #{tpu_custom_call.1} parent=39 // pred_check
          %p382 = pneg %p131
        $region42: #{tpu_custom_call.1} parent=39 // pred_check_branch
          %384 = sbr.rel (%p382) target = $region44
        $region43: #{tpu_custom_call.1} parent=39 // pred_region
          %s385 = sand.u32 %s116, 1
          %s386 = scalar_lea.sflag [#allocation4], %s385
          %s387 = sand.u32 %s116, 1
          %s388 = smul.addr %s387, 64
          %s389 = scalar_lea.vmem [#allocation3], %s388
          %390 = dma.done %s386, 1024
        $region44: #{tpu_custom_call.1} parent=39 // pred_fallthru
          _
      $region40: #{tpu_custom_call.1} parent=5 // pred_fallthru
        _
    $region6: #{tpu_custom_call.1} parent=1 // loop_footer
      %s17 = sadd.s32 1, %s13
    $region7: #{tpu_custom_call.1} parent=1 // loop_footer_branch
      %12 = sbr.rel target = $region3
    $region8: #{tpu_custom_call.1} parent=1 // loop_exit
      _
    %391 = vsyncpa [#allocation4], 1
    %s392 = scalar_lea.sflag [#allocation4], 1
    %393 = vsyncpa %s392, 1

</llo_original>
